<compile_context>
chip_gen: v5e
topology: v5e:2x2
jax: 0.10.0
libtpu: 0.0.40
codegen_flags: <defaults>
</compile_context>

<pallas_src>
import functools
import math

import jax
import jax.numpy as jnp
import numpy as np
from jax import lax
from jax.experimental import pallas as pl
from jax.experimental.pallas import tpu as pltpu


# ------------------------------ sizing helpers --------------------------------

def _vmem_limit_bytes():
    """Per-call scoped VMEM limit, derived from the actual chip generation."""
    cap = 64 * 1024 * 1024  # conservative default: v7x per-TensorCore VMEM
    try:
        info = pltpu.get_tpu_info()
        cap_attr = getattr(info, "vmem_capacity_bytes", None)
        if cap_attr:
            cap = int(cap_attr)
    except Exception:
        pass
    return int(min(cap * 3 // 4, 100 * 1024 * 1024))


def _proj_seq_tile(S, B, bytes_per_row, vmem_limit, resident_bytes):
    """Sequence tile for the projection kernels.

    bytes_per_row already includes double-buffering of the activation blocks;
    resident_bytes is counted twice to stay safe if the Buffered(1) request for
    the weight block falls back to default double-buffering.
    """
    budget = max(vmem_limit - 2 * resident_bytes - (4 << 20), 2 << 20)
    ts = budget // max(bytes_per_row, 1)
    if ts >= S:
        return int(S)
    # MXU alignment: make ts*B a multiple of 256 (sublane constraint needs >=8).
    align = max(8, 256 // math.gcd(B, 256))
    ts = max(align, (ts // align) * align)
    return int(min(ts, S))


def _head_block(H, D, S, budget):
    """Largest head-block h_blk (divisor of H, lane-aligned h_blk*D) that fits."""
    lane = 128
    cands = [h for h in range(1, H + 1) if H % h == 0 and (h * D) % lane == 0]
    if not cands:
        cands = [H]  # E % 128 == 0 guarantees the full-head block is lane-aligned

    def vmem_use(h):
        # scores/probs (~3x f32) + double-buffered bias (2x f32)
        # + double-buffered bf16 q/k/v/out column blocks
        return 5 * h * S * S * 4 + 8 * S * h * D * 2

    ok = [h for h in cands if vmem_use(h) <= budget]
    return max(ok) if ok else min(cands)


def _resident_spec(block_shape, index_map, mode):
    """BlockSpec for a constant-index (resident) block, optionally single-buffered."""
    if mode is None:
        return pl.BlockSpec(block_shape, index_map)
    return pl.BlockSpec(block_shape, index_map, pipeline_mode=mode)


def _call_with_resident_fallback(build):
    """Try Buffered(1) for resident blocks; fall back if this build rejects it."""
    try:
        return build(pl.Buffered(1))
    except Exception:
        return build(None)


# ----------------------------- Pallas kernels --------------------------------

def _in_proj_kernel(x_ref, w_ref, b_ref, o_ref):
    # x: (ts, B, E) seq-first f32 tile; w: (E, 3E) K-major bf16; out: (B, ts, 3E) bf16
    ts, B, E = x_ref.shape
    x = x_ref[...].reshape(ts * B, E).astype(jnp.bfloat16)
    y = lax.dot_general(x, w_ref[...], (((1,), (0,)), ((), ())),
                        preferred_element_type=jnp.float32)
    y = y + b_ref[...]
    # relayout to graph-major inside VMEM (cheap vs. a separate HBM transpose)
    o_ref[...] = y.reshape(ts, B, -1).transpose(1, 0, 2).astype(o_ref.dtype)


def _attn_kernel(q_ref, k_ref, v_ref, bias_ref, o_ref, *, h_blk, head_dim, scale):
    # one (graph, head-block) per grid step; q/k/v column blocks are bf16
    S = q_ref.shape[1]
    H, D = h_blk, head_dim
    q = q_ref[0].reshape(S, H, D)
    k = k_ref[0].reshape(S, H, D)
    v = v_ref[0].reshape(S, H, D)
    # bf16 MXU operands, f32 accumulation; contraction on the last dims
    s = jnp.einsum("qhd,khd->hqk", q, k, preferred_element_type=jnp.float32)
    s = s * scale + bias_ref[0]                        # (H, S, S) f32
    m = jnp.max(s, axis=-1, keepdims=True)
    p = jnp.exp(s - m)
    denom = jnp.sum(p, axis=-1, keepdims=True)
    p = p * pl.reciprocal(denom, approx=True)          # EUP slot, ~free
    o = jnp.einsum("hqk,khd->hqd", p.astype(v.dtype), v,
                   preferred_element_type=jnp.float32)
    # lane-dense (S, H*D) output slab
    o_ref[0] = o.transpose(1, 0, 2).reshape(S, H * D).astype(o_ref.dtype)


def _out_proj_kernel(a_ref, w_ref, b_ref, m_ref, o_ref):
    # a: (B, ts, E) bf16; w: (E, E) K-major bf16; mask: (ts, B) i32; out: (ts, B, E) f32
    B, ts, E = a_ref.shape
    a = a_ref[...].reshape(B * ts, E)
    y = lax.dot_general(a, w_ref[...], (((1,), (0,)), ((), ())),
                        preferred_element_type=jnp.float32)
    y = y + b_ref[...]
    y = y.reshape(B, ts, E).transpose(1, 0, 2)          # back to seq-first (ts, B, E)
    keep = (m_ref[...] != 0)[:, :, None]                # (ts, B, 1)
    o_ref[...] = jnp.where(keep, y, 0.0).astype(o_ref.dtype)


# ------------------------------- wrappers -------------------------------------

def _in_proj(query, w_t, b, vmem_limit):
    # query: (S, B, E) f32; w_t: (E, 3E) bf16 K-major; b: (3E,) f32  ->  (B, S, 3E) bf16
    S, B, E = query.shape
    N = w_t.shape[1]
    resident_bytes = E * N * 2 + N * 4
    bytes_per_row = 2 * B * (E * 4 + N * 2)            # double-buffered x(f32)+qkv(bf16)
    ts = _proj_seq_tile(S, B, bytes_per_row, vmem_limit, resident_bytes)
    flops = 2 * S * B * E * N
    bytes_accessed = 4 * S * B * E + 2 * E * N + 4 * N + 2 * S * B * N

    def build(resident_mode):
        return pl.pallas_call(
            _in_proj_kernel,
            out_shape=jax.ShapeDtypeStruct((B, S, N), jnp.bfloat16),
            grid=(pl.cdiv(S, ts),),
            in_specs=[
                pl.BlockSpec((ts, B, E), lambda i: (i, 0, 0)),
                _resident_spec((E, N), lambda i: (0, 0), resident_mode),
                _resident_spec((1, N), lambda i: (0, 0), resident_mode),
            ],
            out_specs=pl.BlockSpec((B, ts, N), lambda i: (0, i, 0)),
            compiler_params=pltpu.CompilerParams(
                dimension_semantics=("parallel",),
                vmem_limit_bytes=vmem_limit),
            cost_estimate=pl.CostEstimate(flops=flops, transcendentals=0,
                                          bytes_accessed=bytes_accessed),
        )(query, w_t, b.reshape(1, N))

    return _call_with_resident_fallback(build)


def _attention(qkv, attn_bias4, num_heads, head_dim, scale, vmem_limit):
    # qkv: (B, S, 3E) bf16; attn_bias4: (B, H, S, S) f32  ->  (B, S, E) bf16
    B, S, N = qkv.shape
    E = N // 3
    H, D = num_heads, head_dim
    h_blk = _head_block(H, D, S, vmem_limit - (4 << 20))
    nhb = H // h_blk
    CB = h_blk * D                                     # lane-aligned column block
    kern = functools.partial(_attn_kernel, h_blk=h_blk, head_dim=D, scale=scale)
    flops = 4 * B * H * S * S * D
    bytes_accessed = 2 * B * S * N + 4 * B * H * S * S + 2 * B * S * E
    return pl.pallas_call(
        kern,
        out_shape=jax.ShapeDtypeStruct((B, S, E), jnp.bfloat16),
        grid=(B, nhb),
        in_specs=[
            pl.BlockSpec((1, S, CB), lambda b, h: (b, 0, h)),            # q cols
            pl.BlockSpec((1, S, CB), lambda b, h: (b, 0, nhb + h)),      # k cols
            pl.BlockSpec((1, S, CB), lambda b, h: (b, 0, 2 * nhb + h)),  # v cols
            pl.BlockSpec((1, h_blk, S, S), lambda b, h: (b, h, 0, 0)),
        ],
        out_specs=pl.BlockSpec((1, S, CB), lambda b, h: (b, 0, h)),
        compiler_params=pltpu.CompilerParams(
            dimension_semantics=("parallel", "parallel"),
            vmem_limit_bytes=vmem_limit),
        cost_estimate=pl.CostEstimate(flops=flops, transcendentals=B * H * S * S,
                                      bytes_accessed=bytes_accessed),
    )(qkv, qkv, qkv, attn_bias4)


def _out_proj_masked(attn, w_t, b, mask_sb, vmem_limit):
    # attn: (B, S, E) bf16; w_t: (E, E) bf16 K-major; mask_sb: (S, B) i32  ->  (S, B, E) f32
    B, S, E = attn.shape
    N = w_t.shape[1]
    resident_bytes = E * N * 2 + N * 4
    bytes_per_row = 2 * B * (E * 2 + N * 4 + 4)        # double-buffered a(bf16)+out(f32)+mask
    ts = _proj_seq_tile(S, B, bytes_per_row, vmem_limit, resident_bytes)
    flops = 2 * S * B * E * N
    bytes_accessed = 2 * S * B * E + 2 * E * N + 4 * N + 4 * S * B + 4 * S * B * N

    def build(resident_mode):
        return pl.pallas_call(
            _out_proj_kernel,
            out_shape=jax.ShapeDtypeStruct((S, B, N), jnp.float32),
            grid=(pl.cdiv(S, ts),),
            in_specs=[
                pl.BlockSpec((B, ts, E), lambda i: (0, i, 0)),
                _resident_spec((E, N), lambda i: (0, 0), resident_mode),
                _resident_spec((1, N), lambda i: (0, 0), resident_mode),
                pl.BlockSpec((ts, B), lambda i: (i, 0)),   # per-row keep mask
            ],
            out_specs=pl.BlockSpec((ts, B, N), lambda i: (i, 0, 0)),
            compiler_params=pltpu.CompilerParams(
                dimension_semantics=("parallel",),
                vmem_limit_bytes=vmem_limit),
            cost_estimate=pl.CostEstimate(flops=flops, transcendentals=0,
                                          bytes_accessed=bytes_accessed),
        )(attn, w_t, b.reshape(1, N), mask_sb)

    return _call_with_resident_fallback(build)


def self_multihead_attention(query, attn_bias, node_non_padding_mask, params,
                             num_heads, scaling_factor=1):
    n_node, n_graph, embed_dim = query.shape
    assert embed_dim % num_heads == 0, "embed_dim must be divisible by num_heads"
    assert embed_dim % 128 == 0, "lane-aligned q/k/v column blocks need E % 128 == 0"
    head_dim = embed_dim // num_heads
    scale = float((head_dim * scaling_factor) ** (-0.5))
    vmem_limit = _vmem_limit_bytes()

    # One-time K-major bf16 weights (in production store params pre-transposed).
    in_w_t = params["in_w"].T.astype(jnp.bfloat16)     # (E, 3E)
    out_w_t = params["out_w"].T.astype(jnp.bfloat16)   # (E, E)

    # (B, S, 3E) fused bf16 projection, produced directly in graph-major layout.
    qkv = _in_proj(query, in_w_t, params["in_b"], vmem_limit)

    # (B*H, S, S) -> (B, H, S, S) is a pure metadata reshape (no HBM traffic).
    # NOTE: padded key positions must already carry large-negative bias entries,
    # matching the PyTorch module's behaviour.
    bias4 = attn_bias.reshape(n_graph, num_heads, n_node, n_node)
    attn = _attention(qkv, bias4, num_heads, head_dim, scale, vmem_limit)  # (B,S,E) bf16

    # tiny (S, B) int32 mask (avoids an (M, 1) lane-width-1 VMEM block).
    mask_sb = node_non_padding_mask.T.astype(jnp.int32)
    return _out_proj_masked(attn, out_w_t, params["out_b"], mask_sb, vmem_limit)


# ------------------------------- reference ------------------------------------

def reference(query, attn_bias, node_non_padding_mask, params, num_heads):
    n_node, n_graph, embed_dim = query.shape
    head_dim = embed_dim // num_heads
    scaling = head_dim ** (-0.5)
    BH = n_graph * num_heads
    x = query.reshape(-1, embed_dim)
    qkv = x @ params["in_w"].T + params["in_b"]
    q, k, v = jnp.split(qkv, 3, axis=-1)
    q = q.reshape(n_node, BH, head_dim).transpose(1, 0, 2) * scaling
    k = k.reshape(n_node, BH, head_dim).transpose(1, 0, 2)
    v = v.reshape(n_node, BH, head_dim).transpose(1, 0, 2)
    s = jnp.einsum("bqd,bkd->bqk", q, k) + attn_bias
    p = jax.nn.softmax(s, axis=-1)
    a = jnp.einsum("bqk,bkd->bqd", p, v)
    a = a.transpose(1, 0, 2).reshape(n_node * n_graph, embed_dim)
    out = a @ params["out_w"].T + params["out_b"]
    out = out.reshape(n_node, n_graph, embed_dim)
    keep = node_non_padding_mask.T[:, :, None]
    return jnp.where(keep, out, 0.0)


# --------------------------------- main ----------------------------------------

if __name__ == "__main__":
    n_node, n_graph, embed_dim, num_heads = 8, 2, 128, 4
    head_dim = embed_dim // num_heads
    BH = n_graph * num_heads

    key = jax.random.PRNGKey(0)
    k1, k2, k3, k4, k5, k6 = jax.random.split(key, 6)

    params = {
        "in_w": 0.05 * jax.random.normal(k1, (3 * embed_dim, embed_dim), jnp.float32),
        "in_b": 0.05 * jax.random.normal(k2, (3 * embed_dim,), jnp.float32),
        "out_w": 0.05 * jax.random.normal(k3, (embed_dim, embed_dim), jnp.float32),
        "out_b": 0.05 * jax.random.normal(k4, (embed_dim,), jnp.float32),
    }

    query = jax.random.normal(k5, (n_node, n_graph, embed_dim), jnp.float32)
    attn_bias = 0.1 * jax.random.normal(k6, (BH, n_node, n_node), jnp.float32)
    # (n_graph, n_node) boolean: pad the last two nodes of graph 1
    node_non_padding_mask = jnp.ones((n_graph, n_node), dtype=bool)
    node_non_padding_mask = node_non_padding_mask.at[1, -2:].set(False)

    out = self_multihead_attention(query, attn_bias, node_non_padding_mask,
                                   params, num_heads)
    out = jax.block_until_ready(out)

    ref = reference(query, attn_bias, node_non_padding_mask, params, num_heads)
    # relaxed tolerance: bf16 MXU operands + approximate EUP reciprocal vs f32 ref.
    np.testing.assert_allclose(np.asarray(out), np.asarray(ref),
                               rtol=2e-2, atol=1.5e-2)

    print("KERNEL_OK")
</pallas_src>

<mosaic_0001>
module attributes {stable_mosaic.version = 11 : i64} {
  func.func @_in_proj_kernel(%arg0: i32, %arg1: memref<8x2x128xf32, #tpu.memory_space<vmem>>, %arg2: memref<128x384xbf16, #tpu.memory_space<vmem>>, %arg3: memref<1x384xf32, #tpu.memory_space<vmem>>, %arg4: memref<2x8x384xbf16, #tpu.memory_space<vmem>>) attributes {dimension_semantics = [#tpu.dimension_semantics<parallel>], iteration_bounds = array<i64: 1>, scalar_prefetch = 0 : i64, scratch_operands = 0 : i64, tpu.core_type = #tpu.core_type<tc>, window_params = [{transform_indices = @transform_0, window_bounds = array<i64: 8, 2, 128>}, {pipeline_mode = #tpu.pipeline_mode<synchronous>, transform_indices = @transform_1, window_bounds = array<i64: 128, 384>}, {pipeline_mode = #tpu.pipeline_mode<synchronous>, transform_indices = @transform_2, window_bounds = array<i64: 1, 384>}, {transform_indices = @transform_3, window_bounds = array<i64: 2, 8, 384>}]} {
    %c0 = arith.constant 0 : index
    %c0_0 = arith.constant 0 : index
    %c0_1 = arith.constant 0 : index
    %0 = vector.load %arg1[%c0, %c0_0, %c0_1] : memref<8x2x128xf32, #tpu.memory_space<vmem>>, vector<8x2x128xf32>
    %1 = vector.shape_cast %0 : vector<8x2x128xf32> to vector<16x128xf32>
    %2 = arith.truncf %1 : vector<16x128xf32> to vector<16x128xbf16>
    %c0_2 = arith.constant 0 : index
    %c0_3 = arith.constant 0 : index
    %3 = vector.load %arg2[%c0_2, %c0_3] : memref<128x384xbf16, #tpu.memory_space<vmem>>, vector<128x384xbf16>
    %cst = arith.constant dense<0.000000e+00> : vector<16x384xf32>
    %4 = tpu.matmul %2, %3, %cst {dimension_numbers = #tpu.dot_dimension_numbers<[1], [0], [0], [1], [0, 0, 1, 1], [], []>} : vector<16x128xbf16>, vector<128x384xbf16>, vector<16x384xf32> -> vector<16x384xf32>
    %c0_4 = arith.constant 0 : index
    %c0_5 = arith.constant 0 : index
    %5 = vector.load %arg3[%c0_4, %c0_5] : memref<1x384xf32, #tpu.memory_space<vmem>>, vector<1x384xf32>
    %6 = vector.broadcast %5 : vector<1x384xf32> to vector<16x384xf32>
    %7 = arith.addf %4, %6 : vector<16x384xf32>
    %8 = vector.shape_cast %7 : vector<16x384xf32> to vector<8x2x384xf32>
    %9 = tpu.transpose %8, [1, 0, 2] : vector<8x2x384xf32> -> vector<2x8x384xf32>
    %10 = arith.truncf %9 : vector<2x8x384xf32> to vector<2x8x384xbf16>
    %c0_6 = arith.constant 0 : index
    %c0_7 = arith.constant 0 : index
    %c0_8 = arith.constant 0 : index
    %11 = vector.load %arg4[%c0_6, %c0_7, %c0_8] : memref<2x8x384xbf16, #tpu.memory_space<vmem>>, vector<2x8x384xbf16>
    tpu.vector_store %arg4[%c0_6, %c0_7, %c0_8], %10 {strides = array<i32>} : memref<2x8x384xbf16, #tpu.memory_space<vmem>>, vector<2x8x384xbf16>,
    return
  }
  func.func @transform_0(%arg0: i32) -> (i32, i32, i32) {
    %c0_i32 = arith.constant 0 : i32
    %c0_i32_0 = arith.constant 0 : i32
    %c0_i32_1 = arith.constant 0 : i32
    return %arg0, %c0_i32, %c0_i32_0 : i32, i32, i32
  }
  func.func @transform_1(%arg0: i32) -> (i32, i32) {
    %c0_i32 = arith.constant 0 : i32
    %c0_i32_0 = arith.constant 0 : i32
    %c0_i32_1 = arith.constant 0 : i32
    return %c0_i32, %c0_i32_0 : i32, i32
  }
  func.func @transform_2(%arg0: i32) -> (i32, i32) {
    %c0_i32 = arith.constant 0 : i32
    %c0_i32_0 = arith.constant 0 : i32
    %c0_i32_1 = arith.constant 0 : i32
    return %c0_i32, %c0_i32_0 : i32, i32
  }
  func.func @transform_3(%arg0: i32) -> (i32, i32, i32) {
    %c0_i32 = arith.constant 0 : i32
    %c0_i32_0 = arith.constant 0 : i32
    %c0_i32_1 = arith.constant 0 : i32
    return %c0_i32, %arg0, %c0_i32_0 : i32, i32, i32
  }
}

module attributes {stable_mosaic.version = 11 : i64} {
  func.func @_in_proj_kernel(%arg0: i32, %arg1: memref<8x2x128xf32, #tpu.memory_space<vmem>>, %arg2: memref<128x384xbf16, #tpu.memory_space<vmem>>, %arg3: memref<1x384xf32, #tpu.memory_space<vmem>>, %arg4: memref<2x8x384xbf16, #tpu.memory_space<vmem>>) attributes {dimension_semantics = [#tpu.dimension_semantics<parallel>], iteration_bounds = array<i64: 1>, scalar_prefetch = 0 : i64, scratch_operands = 0 : i64, tpu.core_type = #tpu.core_type<tc>, window_params = [{transform_indices = @transform_0, window_bounds = array<i64: 8, 2, 128>}, {pipeline_mode = #tpu.pipeline_mode<synchronous>, transform_indices = @transform_1, window_bounds = array<i64: 128, 384>}, {pipeline_mode = #tpu.pipeline_mode<synchronous>, transform_indices = @transform_2, window_bounds = array<i64: 1, 384>}, {transform_indices = @transform_3, window_bounds = array<i64: 2, 8, 384>}]} {
    %c0 = arith.constant 0 : index
    %c0_0 = arith.constant 0 : index
    %c0_1 = arith.constant 0 : index
    %0 = vector.load %arg1[%c0, %c0_0, %c0_1] : memref<8x2x128xf32, #tpu.memory_space<vmem>>, vector<8x2x128xf32>
    %1 = vector.shape_cast %0 : vector<8x2x128xf32> to vector<16x128xf32>
    %2 = arith.truncf %1 : vector<16x128xf32> to vector<16x128xbf16>
    %c0_2 = arith.constant 0 : index
    %c0_3 = arith.constant 0 : index
    %3 = vector.load %arg2[%c0_2, %c0_3] : memref<128x384xbf16, #tpu.memory_space<vmem>>, vector<128x384xbf16>
    %cst = arith.constant dense<0.000000e+00> : vector<16x384xf32>
    %4 = tpu.matmul %2, %3, %cst {dimension_numbers = #tpu.dot_dimension_numbers<[1], [0], [0], [1], [0, 0, 1, 1], [], []>} : vector<16x128xbf16>, vector<128x384xbf16>, vector<16x384xf32> -> vector<16x384xf32>
    %c0_4 = arith.constant 0 : index
    %c0_5 = arith.constant 0 : index
    %5 = vector.load %arg3[%c0_4, %c0_5] : memref<1x384xf32, #tpu.memory_space<vmem>>, vector<1x384xf32>
    %6 = vector.broadcast %5 : vector<1x384xf32> to vector<16x384xf32>
    %7 = arith.addf %4, %6 : vector<16x384xf32>
    %8 = vector.shape_cast %7 : vector<16x384xf32> to vector<8x2x384xf32>
    %9 = tpu.transpose %8, [1, 0, 2] : vector<8x2x384xf32> -> vector<2x8x384xf32>
    %10 = arith.truncf %9 : vector<2x8x384xf32> to vector<2x8x384xbf16>
    %c0_6 = arith.constant 0 : index
    %c0_7 = arith.constant 0 : index
    %c0_8 = arith.constant 0 : index
    %11 = vector.load %arg4[%c0_6, %c0_7, %c0_8] : memref<2x8x384xbf16, #tpu.memory_space<vmem>>, vector<2x8x384xbf16>
    tpu.vector_store %arg4[%c0_6, %c0_7, %c0_8], %10 {strides = array<i32>} : memref<2x8x384xbf16, #tpu.memory_space<vmem>>, vector<2x8x384xbf16>,
    return
  }
  func.func @transform_0(%arg0: i32) -> (i32, i32, i32) {
    %c0_i32 = arith.constant 0 : i32
    %c0_i32_0 = arith.constant 0 : i32
    %c0_i32_1 = arith.constant 0 : i32
    return %arg0, %c0_i32, %c0_i32_0 : i32, i32, i32
  }
  func.func @transform_1(%arg0: i32) -> (i32, i32) {
    %c0_i32 = arith.constant 0 : i32
    %c0_i32_0 = arith.constant 0 : i32
    %c0_i32_1 = arith.constant 0 : i32
    return %c0_i32, %c0_i32_0 : i32, i32
  }
  func.func @transform_2(%arg0: i32) -> (i32, i32) {
    %c0_i32 = arith.constant 0 : i32
    %c0_i32_0 = arith.constant 0 : i32
    %c0_i32_1 = arith.constant 0 : i32
    return %c0_i32, %c0_i32_0 : i32, i32
  }
  func.func @transform_3(%arg0: i32) -> (i32, i32, i32) {
    %c0_i32 = arith.constant 0 : i32
    %c0_i32_0 = arith.constant 0 : i32
    %c0_i32_1 = arith.constant 0 : i32
    return %c0_i32, %arg0, %c0_i32_0 : i32, i32, i32
  }
}

</mosaic_0001>

<llo_original>
// kernel: tpu_custom_call.1
$region0: #{tpu_custom_call.1}
  #allocation0 [shape = 'u32[]', space=smem, size = 0x4, offset = 0x4, fixed_abs, tag = 'smem constant byte address 0x4 - core index']
  #allocation1 [shape = 'u32[72,128]{1,0:T(1,128)}', space=vmem, size = 0x9000, scoped, tag = 'internal scratch']
  %s0 = inlined_call_operand.hbm [shape: f32[8,2,128], index: 0, kind: input, shape index: {}]
  %s1 = inlined_call_operand.hbm [shape: bf16[128,384], index: 1, kind: input, shape index: {}]
  %s2 = inlined_call_operand.hbm [shape: f32[1,384], index: 2, kind: input, shape index: {}]
  %s3 = inlined_call_operand.hbm [shape: bf16[2,8,384], index: 3, kind: output, shape index: {}]
  %s4 = sld [smem:[#allocation0]]
  $region34: #{tpu_custom_call.1} parent=0
    _
  %s6 = ssub.s32 1, %s4
  %s7 = scalar_select 0, %s6, %s4
  $region1: #{tpu_custom_call.1} parent=0
    #allocation2 [shape = 'u8[8192]{0}', space=vmem, size = 0x2000, scoped, tag = 'input window, operand 0, single buffered']
    #allocation3 [shape = 's32[1]{0}', space=sflag, size = 0x4, scoped, tag = 'scoped memory for tpu_custom_call.1']
    #allocation4 [shape = 's32[1]{0}', space=sflag, size = 0x4, scoped, tag = 'scoped memory for tpu_custom_call.1']
    #allocation5 [shape = 'u8[98304]{0}', space=vmem, size = 0x18000, scoped, tag = 'input window, operand 1, single buffered']
    #allocation6 [shape = 's32[1]{0}', space=sflag, size = 0x4, scoped, tag = 'scoped memory for tpu_custom_call.1']
    #allocation7 [shape = 'u8[1536]{0}', space=vmem, size = 0x800, scoped, tag = 'input window, operand 2, single buffered']
    #allocation8 [shape = 'u8[12288]{0}', space=vmem, size = 0x3000, scoped, tag = 'output window, operand 0, single buffered']
    %8 = vsyncpa [#allocation3], 0
    %9 = vsyncpa [#allocation6], 0
    %10 = vsyncpa [#allocation4], 0
    // Predicated region
    $region2: #{tpu_custom_call.1} parent=1 // pred_check
      _
    $region3: #{tpu_custom_call.1} parent=1 // pred_check_branch
      %12 = sbr.rel (0) target = $region5
    $region4: #{tpu_custom_call.1} parent=1 // pred_region
      %14 = vsyncadd [#allocation3], 0
      %s15 = sshll.u32 %s0, 4
      %s16 = int_to_ptr.hbm [resolvable:$true] %s15
      %s17 = sshll.u32 [#allocation2], 4
      %s18 = int_to_ptr.vmem [resolvable:$true] %s17
      %23 = dma.hbm_to_vmem [thread:$0]  %s16, 256, %s18, [#allocation3], 32, 32, 2
    $region5: #{tpu_custom_call.1} parent=1 // pred_fallthru
      _
    // Predicated region
    $region6: #{tpu_custom_call.1} parent=1 // pred_check
      _
    $region7: #{tpu_custom_call.1} parent=1 // pred_check_branch
      %25 = sbr.rel (0) target = $region9
    $region8: #{tpu_custom_call.1} parent=1 // pred_region
      %27 = vsyncadd [#allocation6], 0
      %s28 = sshll.u32 %s1, 4
      %s29 = int_to_ptr.hbm [resolvable:$true] %s28
      %s30 = sshll.u32 [#allocation5], 4
      %s31 = int_to_ptr.vmem [resolvable:$true] %s30
      %36 = dma.hbm_to_vmem [thread:$0]  %s29, 3072, %s31, [#allocation6], 192, 192, 12
    $region9: #{tpu_custom_call.1} parent=1 // pred_fallthru
      _
    // Predicated region
    $region10: #{tpu_custom_call.1} parent=1 // pred_check
      _
    $region11: #{tpu_custom_call.1} parent=1 // pred_check_branch
      %38 = sbr.rel (0) target = $region13
    $region12: #{tpu_custom_call.1} parent=1 // pred_region
      %40 = vsyncadd [#allocation6], 0
      %s42 = sshll.u32 %s2, 4
      %s43 = int_to_ptr.hbm [resolvable:$true] %s42
      %s44 = sshll.u32 [#allocation7], 4
      %s45 = int_to_ptr.vmem [resolvable:$true] %s44
      %47 = dma.hbm_to_vmem [thread:$0]  %s43, 48, %s45, [#allocation6]
    $region13: #{tpu_custom_call.1} parent=1 // pred_fallthru
      _
    // Predicated region
    $region14: #{tpu_custom_call.1} parent=1 // pred_check
      _
    $region15: #{tpu_custom_call.1} parent=1 // pred_check_branch
      %49 = sbr.rel (0) target = $region17
    $region16: #{tpu_custom_call.1} parent=1 // pred_region
      %51 = dma.done [#allocation3], 256
    $region17: #{tpu_custom_call.1} parent=1 // pred_fallthru
      _
    // Predicated region
    $region18: #{tpu_custom_call.1} parent=1 // pred_check
      _
    $region19: #{tpu_custom_call.1} parent=1 // pred_check_branch
      %53 = sbr.rel (0) target = $region21
    $region20: #{tpu_custom_call.1} parent=1 // pred_region
      %55 = dma.done [#allocation6], 3072
    $region21: #{tpu_custom_call.1} parent=1 // pred_fallthru
      _
    // Predicated region
    $region22: #{tpu_custom_call.1} parent=1 // pred_check
      _
    $region23: #{tpu_custom_call.1} parent=1 // pred_check_branch
      %57 = sbr.rel (0) target = $region25
    $region24: #{tpu_custom_call.1} parent=1 // pred_region
      %59 = dma.done [#allocation6], 48
    $region25: #{tpu_custom_call.1} parent=1 // pred_fallthru
      _
    %v60 = vld [vmem:[#allocation2] sm:$0x3]
    %v61 = vld [vmem:[#allocation2 + $0x2] sm:$0x3]
    %v62 = vld [vmem:[#allocation2 + $0x4] sm:$0x3]
    %v63 = vld [vmem:[#allocation2 + $0x6] sm:$0x3]
    %v64 = vld [vmem:[#allocation2 + $0x8] sm:$0x3]
    %v65 = vld [vmem:[#allocation2 + $0xa] sm:$0x3]
    %v66 = vld [vmem:[#allocation2 + $0xc] sm:$0x3]
    %v67 = vld [vmem:[#allocation2 + $0xe] sm:$0x3]
    %76 = vst [vmem:[#allocation1] ss:$4 sm:$0xff] %v60
    %s77 = scalar_lea.vmem [#allocation1], 1
    %78 = vst [vmem:[%s77] ss:$4 sm:$0xff] %v61
    %s79 = scalar_lea.vmem [#allocation1], 2
    %80 = vst [vmem:[%s79] ss:$4 sm:$0xff] %v62
    %s81 = scalar_lea.vmem [#allocation1], 3
    %82 = vst [vmem:[%s81] ss:$4 sm:$0xff] %v63
    %s83 = scalar_lea.vmem [#allocation1], 32
    %84 = vst [vmem:[%s83] ss:$4 sm:$0xff] %v64
    %s85 = scalar_lea.vmem [#allocation1], 33
    %86 = vst [vmem:[%s85] ss:$4 sm:$0xff] %v65
    %s87 = scalar_lea.vmem [#allocation1], 34
    %88 = vst [vmem:[%s87] ss:$4 sm:$0xff] %v66
    %s89 = scalar_lea.vmem [#allocation1], 35
    %90 = vst [vmem:[%s89] ss:$4 sm:$0xff] %v67
    %v91 = vld.sshfl [vmem:[#allocation1] sm:$0xff pattern:$0x73625140]
    %v92 = vld.sshfl [vmem:[#allocation1 + $0x20] sm:$0xff pattern:$0x73625140]
    %v95 = vpack.c.bf16 %v92, %v91
    %v96 = vld [vmem:[#allocation5] sm:$0xff]
    %v97 = vld [vmem:[#allocation5 + $0x8] sm:$0xf]
    %v98 = vld [vmem:[#allocation5 + $0xc] sm:$0xff]
    %v99 = vld [vmem:[#allocation5 + $0x14] sm:$0xf]
    %v100 = vld [vmem:[#allocation5 + $0x18] sm:$0xff]
    %v101 = vld [vmem:[#allocation5 + $0x20] sm:$0xf]
    %v102 = vld [vmem:[#allocation5 + $0x24] sm:$0xff]
    %v103 = vld [vmem:[#allocation5 + $0x2c] sm:$0xf]
    %v104 = vld [vmem:[#allocation5 + $0x30] sm:$0xff]
    %v105 = vld [vmem:[#allocation5 + $0x38] sm:$0xf]
    %v106 = vld [vmem:[#allocation5 + $0x3c] sm:$0xff]
    %v107 = vld [vmem:[#allocation5 + $0x44] sm:$0xf]
    %v108 = vld [vmem:[#allocation5 + $0x48] sm:$0xff]
    %v109 = vld [vmem:[#allocation5 + $0x50] sm:$0xf]
    %v110 = vld [vmem:[#allocation5 + $0x54] sm:$0xff]
    %v111 = vld [vmem:[#allocation5 + $0x5c] sm:$0xf]
    %v112 = vld [vmem:[#allocation5 + $0x60] sm:$0xff]
    %v113 = vld [vmem:[#allocation5 + $0x68] sm:$0xf]
    %v114 = vld [vmem:[#allocation5 + $0x6c] sm:$0xff]
    %v115 = vld [vmem:[#allocation5 + $0x74] sm:$0xf]
    %v116 = vld [vmem:[#allocation5 + $0x78] sm:$0xff]
    %v117 = vld [vmem:[#allocation5 + $0x80] sm:$0xf]
    %v118 = vld [vmem:[#allocation5 + $0x84] sm:$0xff]
    %v119 = vld [vmem:[#allocation5 + $0x8c] sm:$0xf]
    %v120 = vld [vmem:[#allocation5 + $0x90] sm:$0xff]
    %v121 = vld [vmem:[#allocation5 + $0x98] sm:$0xf]
    %v122 = vld [vmem:[#allocation5 + $0x9c] sm:$0xff]
    %v123 = vld [vmem:[#allocation5 + $0xa4] sm:$0xf]
    %v124 = vld [vmem:[#allocation5 + $0xa8] sm:$0xff]
    %v125 = vld [vmem:[#allocation5 + $0xb0] sm:$0xf]
    %v126 = vld [vmem:[#allocation5 + $0xb4] sm:$0xff]
    %v127 = vld [vmem:[#allocation5 + $0xbc] sm:$0xf]
    %v128 = vld [vmem:[#allocation7] sm:$0x7]
    %v130 = vperm.slane %v128, 0
    %v131 = vperm.slane %v128, 1
    %v132 = vperm.slane %v128, 2
    %v168 = vunpack.c.l.b16 %v96
    %v169 = vunpack.c.h.b16 %v96
    %v170 = vunpack.c.l.b16 %v97
    %v171 = vunpack.c.l.b16 %v98
    %v172 = vunpack.c.h.b16 %v98
    %v173 = vunpack.c.l.b16 %v99
    %v174 = vunpack.c.l.b16 %v100
    %v175 = vunpack.c.h.b16 %v100
    %v176 = vunpack.c.l.b16 %v101
    %v177 = vunpack.c.l.b16 %v102
    %v178 = vunpack.c.h.b16 %v102
    %v179 = vunpack.c.l.b16 %v103
    %v180 = vunpack.c.l.b16 %v104
    %v181 = vunpack.c.h.b16 %v104
    %v182 = vunpack.c.l.b16 %v105
    %v183 = vunpack.c.l.b16 %v106
    %v184 = vunpack.c.h.b16 %v106
    %v185 = vunpack.c.l.b16 %v107
    %v186 = vunpack.c.l.b16 %v108
    %v187 = vunpack.c.h.b16 %v108
    %v188 = vunpack.c.l.b16 %v109
    %v189 = vunpack.c.l.b16 %v110
    %v190 = vunpack.c.h.b16 %v110
    %v191 = vunpack.c.l.b16 %v111
    %v192 = vunpack.c.l.b16 %v112
    %v193 = vunpack.c.h.b16 %v112
    %v194 = vunpack.c.l.b16 %v113
    %v195 = vunpack.c.l.b16 %v114
    %v196 = vunpack.c.h.b16 %v114
    %v197 = vunpack.c.l.b16 %v115
    %v198 = vunpack.c.l.b16 %v116
    %v199 = vunpack.c.h.b16 %v116
    %v200 = vunpack.c.l.b16 %v117
    %v201 = vunpack.c.l.b16 %v118
    %v202 = vunpack.c.h.b16 %v118
    %v203 = vunpack.c.l.b16 %v119
    %v204 = vunpack.c.l.b16 %v120
    %v205 = vunpack.c.h.b16 %v120
    %v206 = vunpack.c.l.b16 %v121
    %v207 = vunpack.c.l.b16 %v122
    %v208 = vunpack.c.h.b16 %v122
    %v209 = vunpack.c.l.b16 %v123
    %v210 = vunpack.c.l.b16 %v124
    %v211 = vunpack.c.h.b16 %v124
    %v212 = vunpack.c.l.b16 %v125
    %v213 = vunpack.c.l.b16 %v126
    %v214 = vunpack.c.h.b16 %v126
    %v215 = vunpack.c.l.b16 %v127
    %v216 = vpack.c.b16 %v171, %v168
    %v217 = vpack.c.b16 %v172, %v169
    %v218 = vpack.c.b16 %v173, %v170
    %v219 = vpack.c.b16 %v177, %v174
    %v220 = vpack.c.b16 %v178, %v175
    %v221 = vpack.c.b16 %v179, %v176
    %v222 = vpack.c.b16 %v183, %v180
    %v223 = vpack.c.b16 %v184, %v181
    %v224 = vpack.c.b16 %v185, %v182
    %v225 = vpack.c.b16 %v189, %v186
    %v226 = vpack.c.b16 %v190, %v187
    %v227 = vpack.c.b16 %v191, %v188
    %v228 = vpack.c.b16 %v195, %v192
    %v229 = vpack.c.b16 %v196, %v193
    %v230 = vpack.c.b16 %v197, %v194
    %v231 = vpack.c.b16 %v201, %v198
    %v232 = vpack.c.b16 %v202, %v199
    %v233 = vpack.c.b16 %v203, %v200
    %v234 = vpack.c.b16 %v207, %v204
    %v235 = vpack.c.b16 %v208, %v205
    %v236 = vpack.c.b16 %v209, %v206
    %v237 = vpack.c.b16 %v213, %v210
    %v238 = vpack.c.b16 %v214, %v211
    %v239 = vpack.c.b16 %v215, %v212
    %264 = vmatpush.bf16.msra.mxu0 %v237
    %265 = vmatpush.bf16.msra.mxu0 %v234
    %266 = vmatpush.bf16.msra.mxu0 %v231
    %267 = vmatpush.bf16.msra.mxu0 %v228
    %268 = vmatpush.bf16.msra.mxu0 %v225
    %269 = vmatpush.bf16.msra.mxu0 %v222
    %270 = vmatpush.bf16.msra.mxu0 %v219
    %271 = vmatpush.bf16.msra.mxu0 %v216
    %272 = vmatmul.bf16.gmra.mxu0 %v95
    %v273 = vpop.f32.mrf.mxu0
    %v274 = vadd.f32 %v130, %v273
    %v275 = vpop.f32.mrf.mxu0
    %v276 = vadd.f32 %v130, %v275
    %277 = vdwg.mxu0
    %278 = vmatpush.bf16.msra.mxu0 %v238
    %279 = vmatpush.bf16.msra.mxu0 %v235
    %280 = vmatpush.bf16.msra.mxu0 %v232
    %281 = vmatpush.bf16.msra.mxu0 %v229
    %282 = vmatpush.bf16.msra.mxu0 %v226
    %283 = vmatpush.bf16.msra.mxu0 %v223
    %284 = vmatpush.bf16.msra.mxu0 %v220
    %285 = vmatpush.bf16.msra.mxu0 %v217
    %286 = vmatmul.bf16.gmra.mxu0 %v95
    %v287 = vpop.f32.mrf.mxu0
    %v288 = vadd.f32 %v131, %v287
    %v289 = vpop.f32.mrf.mxu0
    %v290 = vadd.f32 %v131, %v289
    %291 = vdwg.mxu0
    %292 = vmatpush.bf16.msra.mxu0 %v239
    %293 = vmatpush.bf16.msra.mxu0 %v236
    %294 = vmatpush.bf16.msra.mxu0 %v233
    %295 = vmatpush.bf16.msra.mxu0 %v230
    %296 = vmatpush.bf16.msra.mxu0 %v227
    %297 = vmatpush.bf16.msra.mxu0 %v224
    %298 = vmatpush.bf16.msra.mxu0 %v221
    %299 = vmatpush.bf16.msra.mxu0 %v218
    %300 = vmatmul.bf16.gmra.mxu0 %v95
    %v301 = vpop.f32.mrf.mxu0
    %v302 = vadd.f32 %v132, %v301
    %v303 = vpop.f32.mrf.mxu0
    %v304 = vadd.f32 %v132, %v303
    %305 = vdwg.mxu0
    %v312 = vrot.slane %v288, 6
    %v313 = vrot.slane %v302, 4
    %v314 = vrot.slane %v290, 6
    %v315 = vrot.slane %v304, 4
    %vm316 = vcmask 1041408
    %v317 = vsel %vm316, %v274, %v312
    %vm318 = vcmask 1043456
    %v319 = vsel %vm318, %v317, %v313
    %vm320 = vcmask 1043458
    %v321 = vsel %vm320, %v274, %v312
    %vm322 = vcmask 1045506
    %v323 = vsel %vm322, %v321, %v313
    %v324 = vrot.slane %v323, 2
    %vm325 = vcmask 1045508
    %v326 = vsel %vm325, %v274, %v312
    %v327 = vsel %vm318, %v313, %v326
    %v328 = vrot.slane %v327, 4
    %vm329 = vcmask 1045504
    %v330 = vsel %vm329, %v312, %v274
    %v331 = vsel %vm322, %v313, %v330
    %v332 = vrot.slane %v331, 6
    %v333 = vsel %vm316, %v276, %v314
    %v334 = vsel %vm318, %v333, %v315
    %v335 = vsel %vm320, %v276, %v314
    %v336 = vsel %vm322, %v335, %v315
    %v337 = vrot.slane %v336, 2
    %v338 = vsel %vm325, %v276, %v314
    %v339 = vsel %vm318, %v315, %v338
    %v340 = vrot.slane %v339, 4
    %v341 = vsel %vm329, %v314, %v276
    %v342 = vsel %vm322, %v315, %v341
    %v343 = vrot.slane %v342, 6
    %v352 = vrot.slane %v324, 4
    %vm353 = vcmask 1047556
    %v354 = vsel %vm353, %v352, %v319
    %v355 = vrot.slane %v319, 4
    %v356 = vsel %vm353, %v324, %v355
    %v358 = vunpack.c.l.s4 1934713408
    %v359 = vunpack.c.0.s8 %v358
    %v360 = vperm.slane %v354, %v359
    %v362 = vunpack.c.l.s4 1934713408
    %v363 = vunpack.c.0.s8 %v362
    %v364 = vperm.slane %v356, %v363
    %v365 = vrot.slane %v364, 4
    %v366 = vsel %vm353, %v365, %v360
    %v367 = vrot.slane %v360, 4
    %v368 = vsel %vm353, %v364, %v367
    %v369 = vrot.slane %v332, 4
    %v370 = vsel %vm353, %v369, %v328
    %v371 = vrot.slane %v328, 4
    %v372 = vsel %vm353, %v332, %v371
    %v374 = vunpack.c.l.s4 1934713408
    %v375 = vunpack.c.0.s8 %v374
    %v376 = vperm.slane %v370, %v375
    %v378 = vunpack.c.l.s4 1934713408
    %v379 = vunpack.c.0.s8 %v378
    %v380 = vperm.slane %v372, %v379
    %v381 = vrot.slane %v380, 4
    %v382 = vsel %vm353, %v381, %v376
    %v383 = vrot.slane %v376, 4
    %v384 = vsel %vm353, %v380, %v383
    %v385 = vrot.slane %v337, 4
    %v386 = vsel %vm353, %v385, %v334
    %v387 = vrot.slane %v334, 4
    %v388 = vsel %vm353, %v337, %v387
    %v390 = vunpack.c.l.s4 1934713408
    %v391 = vunpack.c.0.s8 %v390
    %v392 = vperm.slane %v386, %v391
    %v394 = vunpack.c.l.s4 1934713408
    %v395 = vunpack.c.0.s8 %v394
    %v396 = vperm.slane %v388, %v395
    %v397 = vrot.slane %v396, 4
    %v398 = vsel %vm353, %v397, %v392
    %v399 = vrot.slane %v392, 4
    %v400 = vsel %vm353, %v396, %v399
    %v401 = vrot.slane %v343, 4
    %v402 = vsel %vm353, %v401, %v340
    %v403 = vrot.slane %v340, 4
    %v404 = vsel %vm353, %v343, %v403
    %v406 = vunpack.c.l.s4 1934713408
    %v407 = vunpack.c.0.s8 %v406
    %v408 = vperm.slane %v402, %v407
    %v410 = vunpack.c.l.s4 1934713408
    %v411 = vunpack.c.0.s8 %v410
    %v412 = vperm.slane %v404, %v411
    %v413 = vrot.slane %v412, 4
    %v414 = vsel %vm353, %v413, %v408
    %v415 = vrot.slane %v408, 4
    %v416 = vsel %vm353, %v412, %v415
    %425 = vst [vmem:[#allocation1] ss:$4 sm:$0xff] %v366
    %s426 = scalar_lea.vmem [#allocation1], 1
    %427 = vst [vmem:[%s426] ss:$4 sm:$0xff] %v382
    %s428 = scalar_lea.vmem [#allocation1], 2
    %429 = vst [vmem:[%s428] ss:$4 sm:$0xff] %v398
    %s430 = scalar_lea.vmem [#allocation1], 3
    %431 = vst [vmem:[%s430] ss:$4 sm:$0xff] %v414
    %v432 = vld.sshfl [vmem:[#allocation1] sm:$0xff pattern:$0x73625140]
    %v433 = vld.sshfl [vmem:[#allocation1 + $0x8] sm:$0xff pattern:$0x73625140]
    %v434 = vld.sshfl [vmem:[#allocation1 + $0x10] sm:$0xff pattern:$0x73625140]
    %s435 = scalar_lea.vmem [#allocation1], 32
    %436 = vst [vmem:[%s435] ss:$4 sm:$0xff] %v368
    %s437 = scalar_lea.vmem [#allocation1], 33
    %438 = vst [vmem:[%s437] ss:$4 sm:$0xff] %v384
    %s439 = scalar_lea.vmem [#allocation1], 34
    %440 = vst [vmem:[%s439] ss:$4 sm:$0xff] %v400
    %s441 = scalar_lea.vmem [#allocation1], 35
    %442 = vst [vmem:[%s441] ss:$4 sm:$0xff] %v416
    %v443 = vld.sshfl [vmem:[#allocation1 + $0x20] sm:$0xff pattern:$0x73625140]
    %v444 = vld.sshfl [vmem:[#allocation1 + $0x28] sm:$0xff pattern:$0x73625140]
    %v445 = vld.sshfl [vmem:[#allocation1 + $0x30] sm:$0xff pattern:$0x73625140]
    %v452 = vpack.c.bf16 %v433, %v432
    %v453 = vpack.c.bf16 %v434, %v434
    %v454 = vpack.c.bf16 %v444, %v443
    %v455 = vpack.c.bf16 %v445, %v445
    %456 = vst [vmem:[#allocation8] sm:$0xff] %v452
    %457 = vst [vmem:[#allocation8 + $0x8] sm:$0xf] %v453
    %458 = vst [vmem:[#allocation8 + $0xc] sm:$0xff] %v454
    %459 = vst [vmem:[#allocation8 + $0x14] sm:$0xf] %v455
    // Predicated region
    $region26: #{tpu_custom_call.1} parent=1 // pred_check
      _
    $region27: #{tpu_custom_call.1} parent=1 // pred_check_branch
      %461 = sbr.rel (0) target = $region29
    $region28: #{tpu_custom_call.1} parent=1 // pred_region
      %463 = vsyncadd [#allocation4], 0
      %s464 = sshll.u32 [#allocation8], 4
      %s465 = int_to_ptr.vmem [resolvable:$true] %s464
      %s466 = sshll.u32 %s3, 4
      %s467 = int_to_ptr.hbm [resolvable:$true] %s466
      %472 = dma.vmem_to_hbm [thread:$0]  %s465, 384, %s467, [#allocation4], 192, 192, 12
    $region29: #{tpu_custom_call.1} parent=1 // pred_fallthru
      _
    // Predicated region
    $region30: #{tpu_custom_call.1} parent=1 // pred_check
      _
    $region31: #{tpu_custom_call.1} parent=1 // pred_check_branch
      %474 = sbr.rel (0) target = $region33
    $region32: #{tpu_custom_call.1} parent=1 // pred_region
      %476 = dma.done [#allocation4], 384
    $region33: #{tpu_custom_call.1} parent=1 // pred_fallthru
      _
    %477 = vsyncpa [#allocation3], 1
    %478 = vsyncpa [#allocation6], 1
    %479 = vsyncpa [#allocation4], 1

// kernel: tpu_custom_call.1
$region0: #{tpu_custom_call.1}
  #allocation0 [shape = 'u32[]', space=smem, size = 0x4, offset = 0x4, fixed_abs, tag = 'smem constant byte address 0x4 - core index']
  #allocation1 [shape = 'u32[72,128]{1,0:T(1,128)}', space=vmem, size = 0x9000, scoped, tag = 'internal scratch']
  %s0 = inlined_call_operand.hbm [shape: f32[8,2,128], index: 0, kind: input, shape index: {}]
  %s1 = inlined_call_operand.hbm [shape: bf16[128,384], index: 1, kind: input, shape index: {}]
  %s2 = inlined_call_operand.hbm [shape: f32[1,384], index: 2, kind: input, shape index: {}]
  %s3 = inlined_call_operand.hbm [shape: bf16[2,8,384], index: 3, kind: output, shape index: {}]
  %s4 = sld [smem:[#allocation0]]
  $region34: #{tpu_custom_call.1} parent=0
    _
  %s6 = ssub.s32 1, %s4
  %s7 = scalar_select 0, %s6, %s4
  $region1: #{tpu_custom_call.1} parent=0
    #allocation2 [shape = 'u8[8192]{0}', space=vmem, size = 0x2000, scoped, tag = 'input window, operand 0, single buffered']
    #allocation3 [shape = 's32[1]{0}', space=sflag, size = 0x4, scoped, tag = 'scoped memory for tpu_custom_call.1']
    #allocation4 [shape = 's32[1]{0}', space=sflag, size = 0x4, scoped, tag = 'scoped memory for tpu_custom_call.1']
    #allocation5 [shape = 'u8[98304]{0}', space=vmem, size = 0x18000, scoped, tag = 'input window, operand 1, single buffered']
    #allocation6 [shape = 's32[1]{0}', space=sflag, size = 0x4, scoped, tag = 'scoped memory for tpu_custom_call.1']
    #allocation7 [shape = 'u8[1536]{0}', space=vmem, size = 0x800, scoped, tag = 'input window, operand 2, single buffered']
    #allocation8 [shape = 'u8[12288]{0}', space=vmem, size = 0x3000, scoped, tag = 'output window, operand 0, single buffered']
    %8 = vsyncpa [#allocation3], 0
    %9 = vsyncpa [#allocation6], 0
    %10 = vsyncpa [#allocation4], 0
    // Predicated region
    $region2: #{tpu_custom_call.1} parent=1 // pred_check
      _
    $region3: #{tpu_custom_call.1} parent=1 // pred_check_branch
      %12 = sbr.rel (0) target = $region5
    $region4: #{tpu_custom_call.1} parent=1 // pred_region
      %14 = vsyncadd [#allocation3], 0
      %s15 = sshll.u32 %s0, 4
      %s16 = int_to_ptr.hbm [resolvable:$true] %s15
      %s17 = sshll.u32 [#allocation2], 4
      %s18 = int_to_ptr.vmem [resolvable:$true] %s17
      %23 = dma.hbm_to_vmem [thread:$0]  %s16, 256, %s18, [#allocation3], 32, 32, 2
    $region5: #{tpu_custom_call.1} parent=1 // pred_fallthru
      _
    // Predicated region
    $region6: #{tpu_custom_call.1} parent=1 // pred_check
      _
    $region7: #{tpu_custom_call.1} parent=1 // pred_check_branch
      %25 = sbr.rel (0) target = $region9
    $region8: #{tpu_custom_call.1} parent=1 // pred_region
      %27 = vsyncadd [#allocation6], 0
      %s28 = sshll.u32 %s1, 4
      %s29 = int_to_ptr.hbm [resolvable:$true] %s28
      %s30 = sshll.u32 [#allocation5], 4
      %s31 = int_to_ptr.vmem [resolvable:$true] %s30
      %36 = dma.hbm_to_vmem [thread:$0]  %s29, 3072, %s31, [#allocation6], 192, 192, 12
    $region9: #{tpu_custom_call.1} parent=1 // pred_fallthru
      _
    // Predicated region
    $region10: #{tpu_custom_call.1} parent=1 // pred_check
      _
    $region11: #{tpu_custom_call.1} parent=1 // pred_check_branch
      %38 = sbr.rel (0) target = $region13
    $region12: #{tpu_custom_call.1} parent=1 // pred_region
      %40 = vsyncadd [#allocation6], 0
      %s42 = sshll.u32 %s2, 4
      %s43 = int_to_ptr.hbm [resolvable:$true] %s42
      %s44 = sshll.u32 [#allocation7], 4
      %s45 = int_to_ptr.vmem [resolvable:$true] %s44
      %47 = dma.hbm_to_vmem [thread:$0]  %s43, 48, %s45, [#allocation6]
    $region13: #{tpu_custom_call.1} parent=1 // pred_fallthru
      _
    // Predicated region
    $region14: #{tpu_custom_call.1} parent=1 // pred_check
      _
    $region15: #{tpu_custom_call.1} parent=1 // pred_check_branch
      %49 = sbr.rel (0) target = $region17
    $region16: #{tpu_custom_call.1} parent=1 // pred_region
      %51 = dma.done [#allocation3], 256
    $region17: #{tpu_custom_call.1} parent=1 // pred_fallthru
      _
    // Predicated region
    $region18: #{tpu_custom_call.1} parent=1 // pred_check
      _
    $region19: #{tpu_custom_call.1} parent=1 // pred_check_branch
      %53 = sbr.rel (0) target = $region21
    $region20: #{tpu_custom_call.1} parent=1 // pred_region
      %55 = dma.done [#allocation6], 3072
    $region21: #{tpu_custom_call.1} parent=1 // pred_fallthru
      _
    // Predicated region
    $region22: #{tpu_custom_call.1} parent=1 // pred_check
      _
    $region23: #{tpu_custom_call.1} parent=1 // pred_check_branch
      %57 = sbr.rel (0) target = $region25
    $region24: #{tpu_custom_call.1} parent=1 // pred_region
      %59 = dma.done [#allocation6], 48
    $region25: #{tpu_custom_call.1} parent=1 // pred_fallthru
      _
    %v60 = vld [vmem:[#allocation2] sm:$0x3]
    %v61 = vld [vmem:[#allocation2 + $0x2] sm:$0x3]
    %v62 = vld [vmem:[#allocation2 + $0x4] sm:$0x3]
    %v63 = vld [vmem:[#allocation2 + $0x6] sm:$0x3]
    %v64 = vld [vmem:[#allocation2 + $0x8] sm:$0x3]
    %v65 = vld [vmem:[#allocation2 + $0xa] sm:$0x3]
    %v66 = vld [vmem:[#allocation2 + $0xc] sm:$0x3]
    %v67 = vld [vmem:[#allocation2 + $0xe] sm:$0x3]
    %76 = vst [vmem:[#allocation1] ss:$4 sm:$0xff] %v60
    %s77 = scalar_lea.vmem [#allocation1], 1
    %78 = vst [vmem:[%s77] ss:$4 sm:$0xff] %v61
    %s79 = scalar_lea.vmem [#allocation1], 2
    %80 = vst [vmem:[%s79] ss:$4 sm:$0xff] %v62
    %s81 = scalar_lea.vmem [#allocation1], 3
    %82 = vst [vmem:[%s81] ss:$4 sm:$0xff] %v63
    %s83 = scalar_lea.vmem [#allocation1], 32
    %84 = vst [vmem:[%s83] ss:$4 sm:$0xff] %v64
    %s85 = scalar_lea.vmem [#allocation1], 33
    %86 = vst [vmem:[%s85] ss:$4 sm:$0xff] %v65
    %s87 = scalar_lea.vmem [#allocation1], 34
    %88 = vst [vmem:[%s87] ss:$4 sm:$0xff] %v66
    %s89 = scalar_lea.vmem [#allocation1], 35
    %90 = vst [vmem:[%s89] ss:$4 sm:$0xff] %v67
    %v91 = vld.sshfl [vmem:[#allocation1] sm:$0xff pattern:$0x73625140]
    %v92 = vld.sshfl [vmem:[#allocation1 + $0x20] sm:$0xff pattern:$0x73625140]
    %v95 = vpack.c.bf16 %v92, %v91
    %v96 = vld [vmem:[#allocation5] sm:$0xff]
    %v97 = vld [vmem:[#allocation5 + $0x8] sm:$0xf]
    %v98 = vld [vmem:[#allocation5 + $0xc] sm:$0xff]
    %v99 = vld [vmem:[#allocation5 + $0x14] sm:$0xf]
    %v100 = vld [vmem:[#allocation5 + $0x18] sm:$0xff]
    %v101 = vld [vmem:[#allocation5 + $0x20] sm:$0xf]
    %v102 = vld [vmem:[#allocation5 + $0x24] sm:$0xff]
    %v103 = vld [vmem:[#allocation5 + $0x2c] sm:$0xf]
    %v104 = vld [vmem:[#allocation5 + $0x30] sm:$0xff]
    %v105 = vld [vmem:[#allocation5 + $0x38] sm:$0xf]
    %v106 = vld [vmem:[#allocation5 + $0x3c] sm:$0xff]
    %v107 = vld [vmem:[#allocation5 + $0x44] sm:$0xf]
    %v108 = vld [vmem:[#allocation5 + $0x48] sm:$0xff]
    %v109 = vld [vmem:[#allocation5 + $0x50] sm:$0xf]
    %v110 = vld [vmem:[#allocation5 + $0x54] sm:$0xff]
    %v111 = vld [vmem:[#allocation5 + $0x5c] sm:$0xf]
    %v112 = vld [vmem:[#allocation5 + $0x60] sm:$0xff]
    %v113 = vld [vmem:[#allocation5 + $0x68] sm:$0xf]
    %v114 = vld [vmem:[#allocation5 + $0x6c] sm:$0xff]
    %v115 = vld [vmem:[#allocation5 + $0x74] sm:$0xf]
    %v116 = vld [vmem:[#allocation5 + $0x78] sm:$0xff]
    %v117 = vld [vmem:[#allocation5 + $0x80] sm:$0xf]
    %v118 = vld [vmem:[#allocation5 + $0x84] sm:$0xff]
    %v119 = vld [vmem:[#allocation5 + $0x8c] sm:$0xf]
    %v120 = vld [vmem:[#allocation5 + $0x90] sm:$0xff]
    %v121 = vld [vmem:[#allocation5 + $0x98] sm:$0xf]
    %v122 = vld [vmem:[#allocation5 + $0x9c] sm:$0xff]
    %v123 = vld [vmem:[#allocation5 + $0xa4] sm:$0xf]
    %v124 = vld [vmem:[#allocation5 + $0xa8] sm:$0xff]
    %v125 = vld [vmem:[#allocation5 + $0xb0] sm:$0xf]
    %v126 = vld [vmem:[#allocation5 + $0xb4] sm:$0xff]
    %v127 = vld [vmem:[#allocation5 + $0xbc] sm:$0xf]
    %v128 = vld [vmem:[#allocation7] sm:$0x7]
    %v130 = vperm.slane %v128, 0
    %v131 = vperm.slane %v128, 1
    %v132 = vperm.slane %v128, 2
    %v168 = vunpack.c.l.b16 %v96
    %v169 = vunpack.c.h.b16 %v96
    %v170 = vunpack.c.l.b16 %v97
    %v171 = vunpack.c.l.b16 %v98
    %v172 = vunpack.c.h.b16 %v98
    %v173 = vunpack.c.l.b16 %v99
    %v174 = vunpack.c.l.b16 %v100
    %v175 = vunpack.c.h.b16 %v100
    %v176 = vunpack.c.l.b16 %v101
    %v177 = vunpack.c.l.b16 %v102
    %v178 = vunpack.c.h.b16 %v102
    %v179 = vunpack.c.l.b16 %v103
    %v180 = vunpack.c.l.b16 %v104
    %v181 = vunpack.c.h.b16 %v104
    %v182 = vunpack.c.l.b16 %v105
    %v183 = vunpack.c.l.b16 %v106
    %v184 = vunpack.c.h.b16 %v106
    %v185 = vunpack.c.l.b16 %v107
    %v186 = vunpack.c.l.b16 %v108
    %v187 = vunpack.c.h.b16 %v108
    %v188 = vunpack.c.l.b16 %v109
    %v189 = vunpack.c.l.b16 %v110
    %v190 = vunpack.c.h.b16 %v110
    %v191 = vunpack.c.l.b16 %v111
    %v192 = vunpack.c.l.b16 %v112
    %v193 = vunpack.c.h.b16 %v112
    %v194 = vunpack.c.l.b16 %v113
    %v195 = vunpack.c.l.b16 %v114
    %v196 = vunpack.c.h.b16 %v114
    %v197 = vunpack.c.l.b16 %v115
    %v198 = vunpack.c.l.b16 %v116
    %v199 = vunpack.c.h.b16 %v116
    %v200 = vunpack.c.l.b16 %v117
    %v201 = vunpack.c.l.b16 %v118
    %v202 = vunpack.c.h.b16 %v118
    %v203 = vunpack.c.l.b16 %v119
    %v204 = vunpack.c.l.b16 %v120
    %v205 = vunpack.c.h.b16 %v120
    %v206 = vunpack.c.l.b16 %v121
    %v207 = vunpack.c.l.b16 %v122
    %v208 = vunpack.c.h.b16 %v122
    %v209 = vunpack.c.l.b16 %v123
    %v210 = vunpack.c.l.b16 %v124
    %v211 = vunpack.c.h.b16 %v124
    %v212 = vunpack.c.l.b16 %v125
    %v213 = vunpack.c.l.b16 %v126
    %v214 = vunpack.c.h.b16 %v126
    %v215 = vunpack.c.l.b16 %v127
    %v216 = vpack.c.b16 %v171, %v168
    %v217 = vpack.c.b16 %v172, %v169
    %v218 = vpack.c.b16 %v173, %v170
    %v219 = vpack.c.b16 %v177, %v174
    %v220 = vpack.c.b16 %v178, %v175
    %v221 = vpack.c.b16 %v179, %v176
    %v222 = vpack.c.b16 %v183, %v180
    %v223 = vpack.c.b16 %v184, %v181
    %v224 = vpack.c.b16 %v185, %v182
    %v225 = vpack.c.b16 %v189, %v186
    %v226 = vpack.c.b16 %v190, %v187
    %v227 = vpack.c.b16 %v191, %v188
    %v228 = vpack.c.b16 %v195, %v192
    %v229 = vpack.c.b16 %v196, %v193
    %v230 = vpack.c.b16 %v197, %v194
    %v231 = vpack.c.b16 %v201, %v198
    %v232 = vpack.c.b16 %v202, %v199
    %v233 = vpack.c.b16 %v203, %v200
    %v234 = vpack.c.b16 %v207, %v204
    %v235 = vpack.c.b16 %v208, %v205
    %v236 = vpack.c.b16 %v209, %v206
    %v237 = vpack.c.b16 %v213, %v210
    %v238 = vpack.c.b16 %v214, %v211
    %v239 = vpack.c.b16 %v215, %v212
    %264 = vmatpush.bf16.msra.mxu0 %v237
    %265 = vmatpush.bf16.msra.mxu0 %v234
    %266 = vmatpush.bf16.msra.mxu0 %v231
    %267 = vmatpush.bf16.msra.mxu0 %v228
    %268 = vmatpush.bf16.msra.mxu0 %v225
    %269 = vmatpush.bf16.msra.mxu0 %v222
    %270 = vmatpush.bf16.msra.mxu0 %v219
    %271 = vmatpush.bf16.msra.mxu0 %v216
    %272 = vmatmul.bf16.gmra.mxu0 %v95
    %v273 = vpop.f32.mrf.mxu0
    %v274 = vadd.f32 %v130, %v273
    %v275 = vpop.f32.mrf.mxu0
    %v276 = vadd.f32 %v130, %v275
    %277 = vdwg.mxu0
    %278 = vmatpush.bf16.msra.mxu0 %v238
    %279 = vmatpush.bf16.msra.mxu0 %v235
    %280 = vmatpush.bf16.msra.mxu0 %v232
    %281 = vmatpush.bf16.msra.mxu0 %v229
    %282 = vmatpush.bf16.msra.mxu0 %v226
    %283 = vmatpush.bf16.msra.mxu0 %v223
    %284 = vmatpush.bf16.msra.mxu0 %v220
    %285 = vmatpush.bf16.msra.mxu0 %v217
    %286 = vmatmul.bf16.gmra.mxu0 %v95
    %v287 = vpop.f32.mrf.mxu0
    %v288 = vadd.f32 %v131, %v287
    %v289 = vpop.f32.mrf.mxu0
    %v290 = vadd.f32 %v131, %v289
    %291 = vdwg.mxu0
    %292 = vmatpush.bf16.msra.mxu0 %v239
    %293 = vmatpush.bf16.msra.mxu0 %v236
    %294 = vmatpush.bf16.msra.mxu0 %v233
    %295 = vmatpush.bf16.msra.mxu0 %v230
    %296 = vmatpush.bf16.msra.mxu0 %v227
    %297 = vmatpush.bf16.msra.mxu0 %v224
    %298 = vmatpush.bf16.msra.mxu0 %v221
    %299 = vmatpush.bf16.msra.mxu0 %v218
    %300 = vmatmul.bf16.gmra.mxu0 %v95
    %v301 = vpop.f32.mrf.mxu0
    %v302 = vadd.f32 %v132, %v301
    %v303 = vpop.f32.mrf.mxu0
    %v304 = vadd.f32 %v132, %v303
    %305 = vdwg.mxu0
    %v312 = vrot.slane %v288, 6
    %v313 = vrot.slane %v302, 4
    %v314 = vrot.slane %v290, 6
    %v315 = vrot.slane %v304, 4
    %vm316 = vcmask 1041408
    %v317 = vsel %vm316, %v274, %v312
    %vm318 = vcmask 1043456
    %v319 = vsel %vm318, %v317, %v313
    %vm320 = vcmask 1043458
    %v321 = vsel %vm320, %v274, %v312
    %vm322 = vcmask 1045506
    %v323 = vsel %vm322, %v321, %v313
    %v324 = vrot.slane %v323, 2
    %vm325 = vcmask 1045508
    %v326 = vsel %vm325, %v274, %v312
    %v327 = vsel %vm318, %v313, %v326
    %v328 = vrot.slane %v327, 4
    %vm329 = vcmask 1045504
    %v330 = vsel %vm329, %v312, %v274
    %v331 = vsel %vm322, %v313, %v330
    %v332 = vrot.slane %v331, 6
    %v333 = vsel %vm316, %v276, %v314
    %v334 = vsel %vm318, %v333, %v315
    %v335 = vsel %vm320, %v276, %v314
    %v336 = vsel %vm322, %v335, %v315
    %v337 = vrot.slane %v336, 2
    %v338 = vsel %vm325, %v276, %v314
    %v339 = vsel %vm318, %v315, %v338
    %v340 = vrot.slane %v339, 4
    %v341 = vsel %vm329, %v314, %v276
    %v342 = vsel %vm322, %v315, %v341
    %v343 = vrot.slane %v342, 6
    %v352 = vrot.slane %v324, 4
    %vm353 = vcmask 1047556
    %v354 = vsel %vm353, %v352, %v319
    %v355 = vrot.slane %v319, 4
    %v356 = vsel %vm353, %v324, %v355
    %v358 = vunpack.c.l.s4 1934713408
    %v359 = vunpack.c.0.s8 %v358
    %v360 = vperm.slane %v354, %v359
    %v362 = vunpack.c.l.s4 1934713408
    %v363 = vunpack.c.0.s8 %v362
    %v364 = vperm.slane %v356, %v363
    %v365 = vrot.slane %v364, 4
    %v366 = vsel %vm353, %v365, %v360
    %v367 = vrot.slane %v360, 4
    %v368 = vsel %vm353, %v364, %v367
    %v369 = vrot.slane %v332, 4
    %v370 = vsel %vm353, %v369, %v328
    %v371 = vrot.slane %v328, 4
    %v372 = vsel %vm353, %v332, %v371
    %v374 = vunpack.c.l.s4 1934713408
    %v375 = vunpack.c.0.s8 %v374
    %v376 = vperm.slane %v370, %v375
    %v378 = vunpack.c.l.s4 1934713408
    %v379 = vunpack.c.0.s8 %v378
    %v380 = vperm.slane %v372, %v379
    %v381 = vrot.slane %v380, 4
    %v382 = vsel %vm353, %v381, %v376
    %v383 = vrot.slane %v376, 4
    %v384 = vsel %vm353, %v380, %v383
    %v385 = vrot.slane %v337, 4
    %v386 = vsel %vm353, %v385, %v334
    %v387 = vrot.slane %v334, 4
    %v388 = vsel %vm353, %v337, %v387
    %v390 = vunpack.c.l.s4 1934713408
    %v391 = vunpack.c.0.s8 %v390
    %v392 = vperm.slane %v386, %v391
    %v394 = vunpack.c.l.s4 1934713408
    %v395 = vunpack.c.0.s8 %v394
    %v396 = vperm.slane %v388, %v395
    %v397 = vrot.slane %v396, 4
    %v398 = vsel %vm353, %v397, %v392
    %v399 = vrot.slane %v392, 4
    %v400 = vsel %vm353, %v396, %v399
    %v401 = vrot.slane %v343, 4
    %v402 = vsel %vm353, %v401, %v340
    %v403 = vrot.slane %v340, 4
    %v404 = vsel %vm353, %v343, %v403
    %v406 = vunpack.c.l.s4 1934713408
    %v407 = vunpack.c.0.s8 %v406
    %v408 = vperm.slane %v402, %v407
    %v410 = vunpack.c.l.s4 1934713408
    %v411 = vunpack.c.0.s8 %v410
    %v412 = vperm.slane %v404, %v411
    %v413 = vrot.slane %v412, 4
    %v414 = vsel %vm353, %v413, %v408
    %v415 = vrot.slane %v408, 4
    %v416 = vsel %vm353, %v412, %v415
    %425 = vst [vmem:[#allocation1] ss:$4 sm:$0xff] %v366
    %s426 = scalar_lea.vmem [#allocation1], 1
    %427 = vst [vmem:[%s426] ss:$4 sm:$0xff] %v382
    %s428 = scalar_lea.vmem [#allocation1], 2
    %429 = vst [vmem:[%s428] ss:$4 sm:$0xff] %v398
    %s430 = scalar_lea.vmem [#allocation1], 3
    %431 = vst [vmem:[%s430] ss:$4 sm:$0xff] %v414
    %v432 = vld.sshfl [vmem:[#allocation1] sm:$0xff pattern:$0x73625140]
    %v433 = vld.sshfl [vmem:[#allocation1 + $0x8] sm:$0xff pattern:$0x73625140]
    %v434 = vld.sshfl [vmem:[#allocation1 + $0x10] sm:$0xff pattern:$0x73625140]
    %s435 = scalar_lea.vmem [#allocation1], 32
    %436 = vst [vmem:[%s435] ss:$4 sm:$0xff] %v368
    %s437 = scalar_lea.vmem [#allocation1], 33
    %438 = vst [vmem:[%s437] ss:$4 sm:$0xff] %v384
    %s439 = scalar_lea.vmem [#allocation1], 34
    %440 = vst [vmem:[%s439] ss:$4 sm:$0xff] %v400
    %s441 = scalar_lea.vmem [#allocation1], 35
    %442 = vst [vmem:[%s441] ss:$4 sm:$0xff] %v416
    %v443 = vld.sshfl [vmem:[#allocation1 + $0x20] sm:$0xff pattern:$0x73625140]
    %v444 = vld.sshfl [vmem:[#allocation1 + $0x28] sm:$0xff pattern:$0x73625140]
    %v445 = vld.sshfl [vmem:[#allocation1 + $0x30] sm:$0xff pattern:$0x73625140]
    %v452 = vpack.c.bf16 %v433, %v432
    %v453 = vpack.c.bf16 %v434, %v434
    %v454 = vpack.c.bf16 %v444, %v443
    %v455 = vpack.c.bf16 %v445, %v445
    %456 = vst [vmem:[#allocation8] sm:$0xff] %v452
    %457 = vst [vmem:[#allocation8 + $0x8] sm:$0xf] %v453
    %458 = vst [vmem:[#allocation8 + $0xc] sm:$0xff] %v454
    %459 = vst [vmem:[#allocation8 + $0x14] sm:$0xf] %v455
    // Predicated region
    $region26: #{tpu_custom_call.1} parent=1 // pred_check
      _
    $region27: #{tpu_custom_call.1} parent=1 // pred_check_branch
      %461 = sbr.rel (0) target = $region29
    $region28: #{tpu_custom_call.1} parent=1 // pred_region
      %463 = vsyncadd [#allocation4], 0
      %s464 = sshll.u32 [#allocation8], 4
      %s465 = int_to_ptr.vmem [resolvable:$true] %s464
      %s466 = sshll.u32 %s3, 4
      %s467 = int_to_ptr.hbm [resolvable:$true] %s466
      %472 = dma.vmem_to_hbm [thread:$0]  %s465, 384, %s467, [#allocation4], 192, 192, 12
    $region29: #{tpu_custom_call.1} parent=1 // pred_fallthru
      _
    // Predicated region
    $region30: #{tpu_custom_call.1} parent=1 // pred_check
      _
    $region31: #{tpu_custom_call.1} parent=1 // pred_check_branch
      %474 = sbr.rel (0) target = $region33
    $region32: #{tpu_custom_call.1} parent=1 // pred_region
      %476 = dma.done [#allocation4], 384
    $region33: #{tpu_custom_call.1} parent=1 // pred_fallthru
      _
    %477 = vsyncpa [#allocation3], 1
    %478 = vsyncpa [#allocation6], 1
    %479 = vsyncpa [#allocation4], 1

</llo_original>
